<compile_context>
chip_gen: v7x
topology: tpu7x:2x2x1
jax: 0.10.0
libtpu: 0.0.40
codegen_flags: <defaults>
</compile_context>

<pallas_src>
import functools

import jax
import jax.numpy as jnp
import numpy as np
from jax import lax
from jax.experimental import pallas as pl
from jax.experimental.pallas import tpu as pltpu

NUMBER_OF_GROUPS = 4  # matches `number_of_groups` in the PyTorch file


def _sepconv_kernel(x_ref, whi_ref, wlo_ref, b_ref, o_ref, xbuf, *,
                    C, H, W, kH, kW, dil, pad, Wp_pad, Lacc):
    """One batch element, fully fused depthwise+pointwise conv.

    x_ref   : (1, C, H*W)        unpadded input, spatial dims flattened, VMEM
    whi_ref : (Cout, kH*kW*C)    fused weight, bf16 high part, VMEM
    wlo_ref : (Cout, kH*kW*C)    fused weight, bf16 low part, VMEM
    b_ref   : (Cout, 1)          fused bias (w_pw @ b_dw + b_pw), f32, VMEM
    o_ref   : (1, Cout, Lacc)    flat output, row pitch Wp_pad, VMEM
    xbuf    : (C, Lbuf) f32      zero-padded, row-pitched scratch, VMEM
    """
    # ---- in-kernel zero padding -------------------------------------------
    # Scratch persists across grid steps (and each megacore only runs a subset
    # of a "parallel" grid), so re-zero it every step; it is only a few vregs.
    xbuf[...] = jnp.zeros_like(xbuf)
    for r in range(H):                      # scatter rows at the padded pitch
        dst = (r + pad) * Wp_pad + pad
        xbuf[:, dst:dst + W] = x_ref[0, :, r * W:(r + 1) * W]

    # ---- im2col: kH*kW lane-dense shifted views stacked along sublanes ----
    cols = []
    for kh in range(kH):
        for kw in range(kW):
            start = kh * dil * Wp_pad + kw * dil
            cols.append(xbuf[:, start:start + Lacc])
    xcol = jnp.concatenate(cols, axis=0)            # (kH*kW*C, Lacc), f32

    # ---- fused conv = one MXU matmul, bf16_3x ("Precision.HIGH") ----------
    x_hi = xcol.astype(jnp.bfloat16)
    x_lo = (xcol - x_hi.astype(jnp.float32)).astype(jnp.bfloat16)
    w_hi = whi_ref[...]
    w_lo = wlo_ref[...]
    out = jnp.dot(w_hi, x_hi, preferred_element_type=jnp.float32)
    out = out + jnp.dot(w_hi, x_lo, preferred_element_type=jnp.float32)
    out = out + jnp.dot(w_lo, x_hi, preferred_element_type=jnp.float32)

    o_ref[0] = (out + b_ref[...]).astype(o_ref.dtype)


def separable_conv2d(x, w_dw, b_dw, w_pw, b_pw, *, kernel_size, stride=1,
                     padding=0, dilation=1, groups=NUMBER_OF_GROUPS):
    """x: (N, C, H, W) float32.  Returns (N, Cout, Ho, Wo)."""
    N, C, H, W = x.shape
    assert stride == 1          # TODO(synk): strided windows not supported
    assert w_pw.shape[-2:] == (1, 1), "pointwise conv must be 1x1"
    Cout = w_pw.shape[0]
    kH = kW = kernel_size
    cpg = C // groups

    Hp, Wp = H + 2 * padding, W + 2 * padding
    Ho = Hp - dilation * (kH - 1)
    Wo = Wp - dilation * (kW - 1)

    Wp_pad = ((Wp + 7) // 8) * 8                   # row pitch of padded buffer
    Lacc = Ho * Wp_pad                             # flat output width per image
    Lbuf = Hp * Wp_pad + (kW - 1) * dilation       # worst-case tap slice end
    Lbuf = ((Lbuf + 127) // 128) * 128

    # ---- fold the grouped depthwise conv into the pointwise conv -----------
    w_pw2 = w_pw.reshape(Cout, C).astype(jnp.float32)
    m = jnp.arange(C)[:, None, None]                   # mid (depthwise-out) ch
    i = jnp.arange(cpg)[None, :, None]                 # within-group input ch
    c = jnp.arange(C)[None, None, :]                   # input channel
    wiring = (((m // cpg) * cpg + i) == c).astype(jnp.float32)      # (C,cpg,C)
    wd_full = jnp.einsum('mihw,mic->mchw', w_dw.astype(jnp.float32), wiring)
    w_eff = jnp.einsum('om,mchw->ohwc', w_pw2, wd_full)             # (Cout,kH,kW,C)
    w_cat = w_eff.reshape(Cout, kH * kW * C)                        # tap-major cols
    # bf16 hi/lo split of the fused weight (operands of the bf16_3x matmul).
    w_hi = w_cat.astype(jnp.bfloat16)
    w_lo = (w_cat - w_hi.astype(jnp.float32)).astype(jnp.bfloat16)
    b_eff = (w_pw2 @ b_dw.astype(jnp.float32)
             + b_pw.astype(jnp.float32)).reshape(Cout, 1)

    # Free dim-collapse; no wrapper-side padding / extra HBM round trip.
    x_flat = x.reshape(N, C, H * W)

    kernel = functools.partial(
        _sepconv_kernel, C=C, H=H, W=W, kH=kH, kW=kW, dil=dilation,
        pad=padding, Wp_pad=Wp_pad, Lacc=Lacc)

    out_flat = pl.pallas_call(
        kernel,
        out_shape=jax.ShapeDtypeStruct((N, Cout, Lacc), x.dtype),
        grid_spec=pltpu.PrefetchScalarGridSpec(
            num_scalar_prefetch=0,
            grid=(N,),
            in_specs=[
                pl.BlockSpec((1, C, H * W), lambda n: (n, 0, 0)),
                pl.BlockSpec((Cout, kH * kW * C), lambda n: (0, 0)),
                pl.BlockSpec((Cout, kH * kW * C), lambda n: (0, 0)),
                pl.BlockSpec((Cout, 1), lambda n: (0, 0)),
            ],
            out_specs=pl.BlockSpec((1, Cout, Lacc), lambda n: (n, 0, 0)),
            scratch_shapes=[pltpu.VMEM((C, Lbuf), jnp.float32)],
        ),
        compiler_params=pltpu.CompilerParams(
            dimension_semantics=("parallel",)),
    )(x_flat, w_hi, w_lo, b_eff)

    # Crop the row-pitch padding back to the true spatial shape.
    return out_flat.reshape(N, Cout, Ho, Wp_pad)[:, :, :, :Wo]


def _reference(x, w_dw, b_dw, w_pw, b_pw, *, padding, dilation, groups):
    dn = ("NCHW", "OIHW", "NCHW")
    y = lax.conv_general_dilated(
        x, w_dw, window_strides=(1, 1),
        padding=((padding, padding), (padding, padding)),
        rhs_dilation=(dilation, dilation),
        dimension_numbers=dn, feature_group_count=groups,
        precision=lax.Precision.HIGHEST)
    y = y + b_dw[None, :, None, None]
    z = lax.conv_general_dilated(
        y, w_pw, window_strides=(1, 1), padding="VALID",
        dimension_numbers=dn, feature_group_count=1,
        precision=lax.Precision.HIGHEST)
    return z + b_pw[None, :, None, None]


if __name__ == "__main__":
    # Module config: SeparableConv2D(in_channels=4, out_channels=8, kernel_size=3,
    #                                stride=1, padding=1, dilation=1, bias=True)
    N, Cin, Cout, H, W = 2, 4, 8, 16, 16
    K, stride, padding, dilation = 3, 1, 1, 1

    key = jax.random.PRNGKey(0)
    k1, k2, k3, k4, k5, k6 = jax.random.split(key, 6)

    x = jax.random.normal(k1, (N, Cin, H, W), dtype=jnp.float32)
    # depthwise (grouped) conv weight: (out=Cin, Cin//groups, K, K), bias (Cin,)
    w_dw = jax.random.normal(k2, (Cin, Cin // NUMBER_OF_GROUPS, K, K),
                             dtype=jnp.float32) * 0.1
    b_dw = jax.random.normal(k3, (Cin,), dtype=jnp.float32) * 0.1
    # pointwise conv weight: (Cout, Cin, 1, 1), bias (Cout,)
    w_pw = jax.random.normal(k4, (Cout, Cin, 1, 1), dtype=jnp.float32) * 0.1
    b_pw = jax.random.normal(k5, (Cout,), dtype=jnp.float32) * 0.1

    sep_fn = jax.jit(functools.partial(
        separable_conv2d, kernel_size=K, stride=stride, padding=padding,
        dilation=dilation, groups=NUMBER_OF_GROUPS))
    out = jax.block_until_ready(sep_fn(x, w_dw, b_dw, w_pw, b_pw))
    ref = _reference(x, w_dw, b_dw, w_pw, b_pw,
                     padding=padding, dilation=dilation,
                     groups=NUMBER_OF_GROUPS)
    np.testing.assert_allclose(np.asarray(out), np.asarray(ref),
                               rtol=2e-4, atol=2e-5)

    # Also exercise the general grouped fold (cpg > 1), per the review's
    # correctness concern (groups=2 -> 2 input channels per depthwise output).
    groups2 = 2
    w_dw2 = jax.random.normal(k6, (Cin, Cin // groups2, K, K),
                              dtype=jnp.float32) * 0.1
    sep_fn2 = jax.jit(functools.partial(
        separable_conv2d, kernel_size=K, stride=stride, padding=padding,
        dilation=dilation, groups=groups2))
    out2 = jax.block_until_ready(sep_fn2(x, w_dw2, b_dw, w_pw, b_pw))
    ref2 = _reference(x, w_dw2, b_dw, w_pw, b_pw,
                      padding=padding, dilation=dilation, groups=groups2)
    np.testing.assert_allclose(np.asarray(out2), np.asarray(ref2),
                               rtol=2e-4, atol=2e-5)

    print("KERNEL_OK")
</pallas_src>

<mosaic_0001>
module attributes {stable_mosaic.version = 11 : i64} {
  func.func @_sepconv_kernel(%arg0: i32, %arg1: memref<1x4x256xf32, #tpu.memory_space<vmem>>, %arg2: memref<8x36xbf16, #tpu.memory_space<vmem>>, %arg3: memref<8x36xbf16, #tpu.memory_space<vmem>>, %arg4: memref<8x1xf32, #tpu.memory_space<vmem>>, %arg5: memref<1x8x384xf32, #tpu.memory_space<vmem>>, %arg6: memref<4x512xf32, #tpu.memory_space<vmem>>) attributes {dimension_semantics = [#tpu.dimension_semantics<parallel>], iteration_bounds = array<i64: 2>, scalar_prefetch = 0 : i64, scratch_operands = 1 : i64, tpu.core_type = #tpu.core_type<tc>, window_params = [{transform_indices = @transform_0, window_bounds = array<i64: 1, 4, 256>}, {pipeline_mode = #tpu.pipeline_mode<synchronous>, transform_indices = @transform_1, window_bounds = array<i64: 8, 36>}, {pipeline_mode = #tpu.pipeline_mode<synchronous>, transform_indices = @transform_2, window_bounds = array<i64: 8, 36>}, {pipeline_mode = #tpu.pipeline_mode<synchronous>, transform_indices = @transform_3, window_bounds = array<i64: 8, 1>}, {transform_indices = @transform_4, window_bounds = array<i64: 1, 8, 384>}]} {
    %cst = arith.constant 0.000000e+00 : f32
    %0 = vector.broadcast %cst : f32 to vector<4x512xf32>
    %c0 = arith.constant 0 : index
    %c0_0 = arith.constant 0 : index
    %1 = vector.load %arg6[%c0, %c0_0] : memref<4x512xf32, #tpu.memory_space<vmem>>, vector<4x512xf32>
    tpu.vector_store %arg6[%c0, %c0_0], %0 {strides = array<i32>} : memref<4x512xf32, #tpu.memory_space<vmem>>, vector<4x512xf32>,
    %c0_1 = arith.constant 0 : index
    %c0_2 = arith.constant 0 : index
    %c0_3 = arith.constant 0 : index
    %2 = vector.load %arg1[%c0_1, %c0_2, %c0_3] : memref<1x4x256xf32, #tpu.memory_space<vmem>>, vector<1x4x16xf32>
    %3 = vector.shape_cast %2 : vector<1x4x16xf32> to vector<4x16xf32>
    %c0_4 = arith.constant 0 : index
    %c25 = arith.constant 25 : index
    %4 = vector.load %arg6[%c0_4, %c25] : memref<4x512xf32, #tpu.memory_space<vmem>>, vector<4x16xf32>
    tpu.vector_store %arg6[%c0_4, %c25], %3 {strides = array<i32>} : memref<4x512xf32, #tpu.memory_space<vmem>>, vector<4x16xf32>,
    %c0_5 = arith.constant 0 : index
    %c0_6 = arith.constant 0 : index
    %c16 = arith.constant 16 : index
    %5 = vector.load %arg1[%c0_5, %c0_6, %c16] : memref<1x4x256xf32, #tpu.memory_space<vmem>>, vector<1x4x16xf32>
    %6 = vector.shape_cast %5 : vector<1x4x16xf32> to vector<4x16xf32>
    %c0_7 = arith.constant 0 : index
    %c49 = arith.constant 49 : index
    %7 = vector.load %arg6[%c0_7, %c49] : memref<4x512xf32, #tpu.memory_space<vmem>>, vector<4x16xf32>
    tpu.vector_store %arg6[%c0_7, %c49], %6 {strides = array<i32>} : memref<4x512xf32, #tpu.memory_space<vmem>>, vector<4x16xf32>,
    %c0_8 = arith.constant 0 : index
    %c0_9 = arith.constant 0 : index
    %c32 = arith.constant 32 : index
    %8 = vector.load %arg1[%c0_8, %c0_9, %c32] : memref<1x4x256xf32, #tpu.memory_space<vmem>>, vector<1x4x16xf32>
    %9 = vector.shape_cast %8 : vector<1x4x16xf32> to vector<4x16xf32>
    %c0_10 = arith.constant 0 : index
    %c73 = arith.constant 73 : index
    %10 = vector.load %arg6[%c0_10, %c73] : memref<4x512xf32, #tpu.memory_space<vmem>>, vector<4x16xf32>
    tpu.vector_store %arg6[%c0_10, %c73], %9 {strides = array<i32>} : memref<4x512xf32, #tpu.memory_space<vmem>>, vector<4x16xf32>,
    %c0_11 = arith.constant 0 : index
    %c0_12 = arith.constant 0 : index
    %c48 = arith.constant 48 : index
    %11 = vector.load %arg1[%c0_11, %c0_12, %c48] : memref<1x4x256xf32, #tpu.memory_space<vmem>>, vector<1x4x16xf32>
    %12 = vector.shape_cast %11 : vector<1x4x16xf32> to vector<4x16xf32>
    %c0_13 = arith.constant 0 : index
    %c97 = arith.constant 97 : index
    %13 = vector.load %arg6[%c0_13, %c97] : memref<4x512xf32, #tpu.memory_space<vmem>>, vector<4x16xf32>
    tpu.vector_store %arg6[%c0_13, %c97], %12 {strides = array<i32>} : memref<4x512xf32, #tpu.memory_space<vmem>>, vector<4x16xf32>,
    %c0_14 = arith.constant 0 : index
    %c0_15 = arith.constant 0 : index
    %c64 = arith.constant 64 : index
    %14 = vector.load %arg1[%c0_14, %c0_15, %c64] : memref<1x4x256xf32, #tpu.memory_space<vmem>>, vector<1x4x16xf32>
    %15 = vector.shape_cast %14 : vector<1x4x16xf32> to vector<4x16xf32>
    %c0_16 = arith.constant 0 : index
    %c121 = arith.constant 121 : index
    %16 = vector.load %arg6[%c0_16, %c121] : memref<4x512xf32, #tpu.memory_space<vmem>>, vector<4x16xf32>
    tpu.vector_store %arg6[%c0_16, %c121], %15 {strides = array<i32>} : memref<4x512xf32, #tpu.memory_space<vmem>>, vector<4x16xf32>,
    %c0_17 = arith.constant 0 : index
    %c0_18 = arith.constant 0 : index
    %c80 = arith.constant 80 : index
    %17 = vector.load %arg1[%c0_17, %c0_18, %c80] : memref<1x4x256xf32, #tpu.memory_space<vmem>>, vector<1x4x16xf32>
    %18 = vector.shape_cast %17 : vector<1x4x16xf32> to vector<4x16xf32>
    %c0_19 = arith.constant 0 : index
    %c145 = arith.constant 145 : index
    %19 = vector.load %arg6[%c0_19, %c145] : memref<4x512xf32, #tpu.memory_space<vmem>>, vector<4x16xf32>
    tpu.vector_store %arg6[%c0_19, %c145], %18 {strides = array<i32>} : memref<4x512xf32, #tpu.memory_space<vmem>>, vector<4x16xf32>,
    %c0_20 = arith.constant 0 : index
    %c0_21 = arith.constant 0 : index
    %c96 = arith.constant 96 : index
    %20 = vector.load %arg1[%c0_20, %c0_21, %c96] : memref<1x4x256xf32, #tpu.memory_space<vmem>>, vector<1x4x16xf32>
    %21 = vector.shape_cast %20 : vector<1x4x16xf32> to vector<4x16xf32>
    %c0_22 = arith.constant 0 : index
    %c169 = arith.constant 169 : index
    %22 = vector.load %arg6[%c0_22, %c169] : memref<4x512xf32, #tpu.memory_space<vmem>>, vector<4x16xf32>
    tpu.vector_store %arg6[%c0_22, %c169], %21 {strides = array<i32>} : memref<4x512xf32, #tpu.memory_space<vmem>>, vector<4x16xf32>,
    %c0_23 = arith.constant 0 : index
    %c0_24 = arith.constant 0 : index
    %c112 = arith.constant 112 : index
    %23 = vector.load %arg1[%c0_23, %c0_24, %c112] : memref<1x4x256xf32, #tpu.memory_space<vmem>>, vector<1x4x16xf32>
    %24 = vector.shape_cast %23 : vector<1x4x16xf32> to vector<4x16xf32>
    %c0_25 = arith.constant 0 : index
    %c193 = arith.constant 193 : index
    %25 = vector.load %arg6[%c0_25, %c193] : memref<4x512xf32, #tpu.memory_space<vmem>>, vector<4x16xf32>
    tpu.vector_store %arg6[%c0_25, %c193], %24 {strides = array<i32>} : memref<4x512xf32, #tpu.memory_space<vmem>>, vector<4x16xf32>,
    %c0_26 = arith.constant 0 : index
    %c0_27 = arith.constant 0 : index
    %c128 = arith.constant 128 : index
    %26 = vector.load %arg1[%c0_26, %c0_27, %c128] : memref<1x4x256xf32, #tpu.memory_space<vmem>>, vector<1x4x16xf32>
    %27 = vector.shape_cast %26 : vector<1x4x16xf32> to vector<4x16xf32>
    %c0_28 = arith.constant 0 : index
    %c217 = arith.constant 217 : index
    %28 = vector.load %arg6[%c0_28, %c217] : memref<4x512xf32, #tpu.memory_space<vmem>>, vector<4x16xf32>
    tpu.vector_store %arg6[%c0_28, %c217], %27 {strides = array<i32>} : memref<4x512xf32, #tpu.memory_space<vmem>>, vector<4x16xf32>,
    %c0_29 = arith.constant 0 : index
    %c0_30 = arith.constant 0 : index
    %c144 = arith.constant 144 : index
    %29 = vector.load %arg1[%c0_29, %c0_30, %c144] : memref<1x4x256xf32, #tpu.memory_space<vmem>>, vector<1x4x16xf32>
    %30 = vector.shape_cast %29 : vector<1x4x16xf32> to vector<4x16xf32>
    %c0_31 = arith.constant 0 : index
    %c241 = arith.constant 241 : index
    %31 = vector.load %arg6[%c0_31, %c241] : memref<4x512xf32, #tpu.memory_space<vmem>>, vector<4x16xf32>
    tpu.vector_store %arg6[%c0_31, %c241], %30 {strides = array<i32>} : memref<4x512xf32, #tpu.memory_space<vmem>>, vector<4x16xf32>,
    %c0_32 = arith.constant 0 : index
    %c0_33 = arith.constant 0 : index
    %c160 = arith.constant 160 : index
    %32 = vector.load %arg1[%c0_32, %c0_33, %c160] : memref<1x4x256xf32, #tpu.memory_space<vmem>>, vector<1x4x16xf32>
    %33 = vector.shape_cast %32 : vector<1x4x16xf32> to vector<4x16xf32>
    %c0_34 = arith.constant 0 : index
    %c265 = arith.constant 265 : index
    %34 = vector.load %arg6[%c0_34, %c265] : memref<4x512xf32, #tpu.memory_space<vmem>>, vector<4x16xf32>
    tpu.vector_store %arg6[%c0_34, %c265], %33 {strides = array<i32>} : memref<4x512xf32, #tpu.memory_space<vmem>>, vector<4x16xf32>,
    %c0_35 = arith.constant 0 : index
    %c0_36 = arith.constant 0 : index
    %c176 = arith.constant 176 : index
    %35 = vector.load %arg1[%c0_35, %c0_36, %c176] : memref<1x4x256xf32, #tpu.memory_space<vmem>>, vector<1x4x16xf32>
    %36 = vector.shape_cast %35 : vector<1x4x16xf32> to vector<4x16xf32>
    %c0_37 = arith.constant 0 : index
    %c289 = arith.constant 289 : index
    %37 = vector.load %arg6[%c0_37, %c289] : memref<4x512xf32, #tpu.memory_space<vmem>>, vector<4x16xf32>
    tpu.vector_store %arg6[%c0_37, %c289], %36 {strides = array<i32>} : memref<4x512xf32, #tpu.memory_space<vmem>>, vector<4x16xf32>,
    %c0_38 = arith.constant 0 : index
    %c0_39 = arith.constant 0 : index
    %c192 = arith.constant 192 : index
    %38 = vector.load %arg1[%c0_38, %c0_39, %c192] : memref<1x4x256xf32, #tpu.memory_space<vmem>>, vector<1x4x16xf32>
    %39 = vector.shape_cast %38 : vector<1x4x16xf32> to vector<4x16xf32>
    %c0_40 = arith.constant 0 : index
    %c313 = arith.constant 313 : index
    %40 = vector.load %arg6[%c0_40, %c313] : memref<4x512xf32, #tpu.memory_space<vmem>>, vector<4x16xf32>
    tpu.vector_store %arg6[%c0_40, %c313], %39 {strides = array<i32>} : memref<4x512xf32, #tpu.memory_space<vmem>>, vector<4x16xf32>,
    %c0_41 = arith.constant 0 : index
    %c0_42 = arith.constant 0 : index
    %c208 = arith.constant 208 : index
    %41 = vector.load %arg1[%c0_41, %c0_42, %c208] : memref<1x4x256xf32, #tpu.memory_space<vmem>>, vector<1x4x16xf32>
    %42 = vector.shape_cast %41 : vector<1x4x16xf32> to vector<4x16xf32>
    %c0_43 = arith.constant 0 : index
    %c337 = arith.constant 337 : index
    %43 = vector.load %arg6[%c0_43, %c337] : memref<4x512xf32, #tpu.memory_space<vmem>>, vector<4x16xf32>
    tpu.vector_store %arg6[%c0_43, %c337], %42 {strides = array<i32>} : memref<4x512xf32, #tpu.memory_space<vmem>>, vector<4x16xf32>,
    %c0_44 = arith.constant 0 : index
    %c0_45 = arith.constant 0 : index
    %c224 = arith.constant 224 : index
    %44 = vector.load %arg1[%c0_44, %c0_45, %c224] : memref<1x4x256xf32, #tpu.memory_space<vmem>>, vector<1x4x16xf32>
    %45 = vector.shape_cast %44 : vector<1x4x16xf32> to vector<4x16xf32>
    %c0_46 = arith.constant 0 : index
    %c361 = arith.constant 361 : index
    %46 = vector.load %arg6[%c0_46, %c361] : memref<4x512xf32, #tpu.memory_space<vmem>>, vector<4x16xf32>
    tpu.vector_store %arg6[%c0_46, %c361], %45 {strides = array<i32>} : memref<4x512xf32, #tpu.memory_space<vmem>>, vector<4x16xf32>,
    %c0_47 = arith.constant 0 : index
    %c0_48 = arith.constant 0 : index
    %c240 = arith.constant 240 : index
    %47 = vector.load %arg1[%c0_47, %c0_48, %c240] : memref<1x4x256xf32, #tpu.memory_space<vmem>>, vector<1x4x16xf32>
    %48 = vector.shape_cast %47 : vector<1x4x16xf32> to vector<4x16xf32>
    %c0_49 = arith.constant 0 : index
    %c385 = arith.constant 385 : index
    %49 = vector.load %arg6[%c0_49, %c385] : memref<4x512xf32, #tpu.memory_space<vmem>>, vector<4x16xf32>
    tpu.vector_store %arg6[%c0_49, %c385], %48 {strides = array<i32>} : memref<4x512xf32, #tpu.memory_space<vmem>>, vector<4x16xf32>,
    %c0_50 = arith.constant 0 : index
    %c0_51 = arith.constant 0 : index
    %50 = vector.load %arg6[%c0_50, %c0_51] : memref<4x512xf32, #tpu.memory_space<vmem>>, vector<4x384xf32>
    %c0_52 = arith.constant 0 : index
    %c1 = arith.constant 1 : index
    %51 = vector.load %arg6[%c0_52, %c1] : memref<4x512xf32, #tpu.memory_space<vmem>>, vector<4x384xf32>
    %c0_53 = arith.constant 0 : index
    %c2 = arith.constant 2 : index
    %52 = vector.load %arg6[%c0_53, %c2] : memref<4x512xf32, #tpu.memory_space<vmem>>, vector<4x384xf32>
    %c0_54 = arith.constant 0 : index
    %c24 = arith.constant 24 : index
    %53 = vector.load %arg6[%c0_54, %c24] : memref<4x512xf32, #tpu.memory_space<vmem>>, vector<4x384xf32>
    %c0_55 = arith.constant 0 : index
    %c25_56 = arith.constant 25 : index
    %54 = vector.load %arg6[%c0_55, %c25_56] : memref<4x512xf32, #tpu.memory_space<vmem>>, vector<4x384xf32>
    %c0_57 = arith.constant 0 : index
    %c26 = arith.constant 26 : index
    %55 = vector.load %arg6[%c0_57, %c26] : memref<4x512xf32, #tpu.memory_space<vmem>>, vector<4x384xf32>
    %c0_58 = arith.constant 0 : index
    %c48_59 = arith.constant 48 : index
    %56 = vector.load %arg6[%c0_58, %c48_59] : memref<4x512xf32, #tpu.memory_space<vmem>>, vector<4x384xf32>
    %c0_60 = arith.constant 0 : index
    %c49_61 = arith.constant 49 : index
    %57 = vector.load %arg6[%c0_60, %c49_61] : memref<4x512xf32, #tpu.memory_space<vmem>>, vector<4x384xf32>
    %c0_62 = arith.constant 0 : index
    %c50 = arith.constant 50 : index
    %58 = vector.load %arg6[%c0_62, %c50] : memref<4x512xf32, #tpu.memory_space<vmem>>, vector<4x384xf32>
    %59 = tpu.concatenate %50, %51, %52, %53, %54, %55, %56, %57, %58 in 0 : vector<4x384xf32>, vector<4x384xf32>, vector<4x384xf32>, vector<4x384xf32>, vector<4x384xf32>, vector<4x384xf32>, vector<4x384xf32>, vector<4x384xf32>, vector<4x384xf32> -> vector<36x384xf32>
    %60 = arith.truncf %59 : vector<36x384xf32> to vector<36x384xbf16>
    %61 = arith.extf %60 : vector<36x384xbf16> to vector<36x384xf32>
    %62 = arith.subf %59, %61 : vector<36x384xf32>
    %63 = arith.truncf %62 : vector<36x384xf32> to vector<36x384xbf16>
    %c0_63 = arith.constant 0 : index
    %c0_64 = arith.constant 0 : index
    %64 = vector.load %arg2[%c0_63, %c0_64] : memref<8x36xbf16, #tpu.memory_space<vmem>>, vector<8x36xbf16>
    %c0_65 = arith.constant 0 : index
    %c0_66 = arith.constant 0 : index
    %65 = vector.load %arg3[%c0_65, %c0_66] : memref<8x36xbf16, #tpu.memory_space<vmem>>, vector<8x36xbf16>
    %cst_67 = arith.constant dense<0.000000e+00> : vector<8x384xf32>
    %66 = tpu.matmul %64, %60, %cst_67 {dimension_numbers = #tpu.dot_dimension_numbers<[1], [0], [0], [1], [0, 0, 1, 1], [], []>} : vector<8x36xbf16>, vector<36x384xbf16>, vector<8x384xf32> -> vector<8x384xf32>
    %cst_68 = arith.constant dense<0.000000e+00> : vector<8x384xf32>
    %67 = tpu.matmul %64, %63, %cst_68 {dimension_numbers = #tpu.dot_dimension_numbers<[1], [0], [0], [1], [0, 0, 1, 1], [], []>} : vector<8x36xbf16>, vector<36x384xbf16>, vector<8x384xf32> -> vector<8x384xf32>
    %68 = arith.addf %66, %67 : vector<8x384xf32>
    %cst_69 = arith.constant dense<0.000000e+00> : vector<8x384xf32>
    %69 = tpu.matmul %65, %60, %cst_69 {dimension_numbers = #tpu.dot_dimension_numbers<[1], [0], [0], [1], [0, 0, 1, 1], [], []>} : vector<8x36xbf16>, vector<36x384xbf16>, vector<8x384xf32> -> vector<8x384xf32>
    %70 = arith.addf %68, %69 : vector<8x384xf32>
    %c0_70 = arith.constant 0 : index
    %c0_71 = arith.constant 0 : index
    %71 = vector.load %arg4[%c0_70, %c0_71] : memref<8x1xf32, #tpu.memory_space<vmem>>, vector<8x1xf32>
    %72 = vector.broadcast %71 : vector<8x1xf32> to vector<8x384xf32>
    %73 = arith.addf %70, %72 : vector<8x384xf32>
    %c0_72 = arith.constant 0 : index
    %c0_73 = arith.constant 0 : index
    %c0_74 = arith.constant 0 : index
    %74 = vector.load %arg5[%c0_72, %c0_73, %c0_74] : memref<1x8x384xf32, #tpu.memory_space<vmem>>, vector<1x8x384xf32>
    %75 = vector.shape_cast %74 : vector<1x8x384xf32> to vector<8x384xf32>
    %76 = vector.shape_cast %73 : vector<8x384xf32> to vector<1x8x384xf32>
    tpu.vector_store %arg5[%c0_72, %c0_73, %c0_74], %76 {strides = array<i32>} : memref<1x8x384xf32, #tpu.memory_space<vmem>>, vector<1x8x384xf32>,
    return
  }
  func.func @transform_0(%arg0: i32) -> (i32, i32, i32) {
    %c0_i32 = arith.constant 0 : i32
    %c0_i32_0 = arith.constant 0 : i32
    %c0_i32_1 = arith.constant 0 : i32
    return %arg0, %c0_i32, %c0_i32_0 : i32, i32, i32
  }
  func.func @transform_1(%arg0: i32) -> (i32, i32) {
    %c0_i32 = arith.constant 0 : i32
    %c0_i32_0 = arith.constant 0 : i32
    %c0_i32_1 = arith.constant 0 : i32
    return %c0_i32, %c0_i32_0 : i32, i32
  }
  func.func @transform_2(%arg0: i32) -> (i32, i32) {
    %c0_i32 = arith.constant 0 : i32
    %c0_i32_0 = arith.constant 0 : i32
    %c0_i32_1 = arith.constant 0 : i32
    return %c0_i32, %c0_i32_0 : i32, i32
  }
  func.func @transform_3(%arg0: i32) -> (i32, i32) {
    %c0_i32 = arith.constant 0 : i32
    %c0_i32_0 = arith.constant 0 : i32
    %c0_i32_1 = arith.constant 0 : i32
    return %c0_i32, %c0_i32_0 : i32, i32
  }
  func.func @transform_4(%arg0: i32) -> (i32, i32, i32) {
    %c0_i32 = arith.constant 0 : i32
    %c0_i32_0 = arith.constant 0 : i32
    %c0_i32_1 = arith.constant 0 : i32
    return %arg0, %c0_i32, %c0_i32_0 : i32, i32, i32
  }
}

</mosaic_0001>

<llo_original>
// kernel: separable_conv2d.1
$region0: #{separable_conv2d.1}
  #allocation0 [shape = 'u32[]', space=smem, size = 0x4, offset = 0x4, fixed_abs, tag = 'smem constant byte address 0x4 - core index']
  #allocation1 [shape = 'u32[144,128]{1,0:T(1,128)}', space=vmem, size = 0x12000, scoped, tag = 'internal scratch']
  #allocation2 [shape = 'f32[4,512]{1,0:T(4,128)}', space=vmem, size = 0x2000, scoped, tag = 'scratch operand']
  %s0 = inlined_call_operand.vmem [shape: f32[2,4,256], index: 0, kind: input, shape index: {}]
  %s1 = inlined_call_operand.vmem [shape: bf16[8,36], index: 1, kind: input, shape index: {}]
  %s2 = inlined_call_operand.vmem [shape: bf16[8,36], index: 2, kind: input, shape index: {}]
  %s3 = inlined_call_operand.vmem [shape: f32[8,1], index: 3, kind: input, shape index: {}]
  %s4 = inlined_call_operand.vmem [shape: f32[2,8,384], index: 4, kind: output, shape index: {}]
  %s5 = sld [smem:[#allocation0]]
  $region49: #{separable_conv2d.1} parent=0
    _
  %s7 = ssub.s32 1, %s5
  %s8 = scalar_select 0, %s7, %s5
  loop: start=0, step=1, limit=4
  $region2: #{separable_conv2d.1} parent=0 // loop_pre_header
    _
  $region3: #{separable_conv2d.1} parent=0 // loop_header
    %s10 = sphi 0, %s14
    %p11 = scmp.ge.s32.totalorder %s10, 4
    %s20 = sphi 0, %s22
    %s23 = sphi 0, %s20
    %s24 = sphi 0, %s23
    %s40 = sphi 0, %s24
    %s44 = sphi 0, %s44
    %s46 = sphi 0, %s44
    %s47 = sphi 0, %s46
    %s61 = sphi 0, %s47
    %s65 = sphi 0, %s65
    %s67 = sphi 0, %s65
    %s68 = sphi 0, %s67
    %s82 = sphi 0, %s68
    %s86 = sphi 0, %s86
    %s88 = sphi 0, %s86
    %s89 = sphi 0, %s88
    %s103 = sphi 0, %s89
    %s109 = sphi 0, %s111
    %s112 = sphi 0, %s109
    %s113 = sphi 0, %s112
    %s129 = sphi 0, %s113
  $region4: #{separable_conv2d.1} parent=0 // loop_header_branch
    %13 = sbr.rel (%p11) target = $region8
  $region5: #{separable_conv2d.1} parent=0 // loop_body
    %s15 = ssub.s32 %s10, 1
    %s16 = ssub.s32 %s10, 2
    %s17 = sadd.s32 %s10, 1
    %s18 = ssub.s32 %s10, %s17
    %p19 = scmp.eq.s32.totalorder %s18, 0
    %s21 = sadd.s32 %s20, 1
    %s22 = scalar_select %p19, %s20, %s21
    %p25 = pneg %p19
    %p26 = scmp.eq.s32.totalorder %s10, 1
    %p27 = por %p25, %p26
    %p28 = scmp.ne.s32.totalorder %s20, %s23
    %p29 = scmp.eq.s32.totalorder %s10, 0
    %p30 = por %p28, %p29
    %p31 = scmp.ne.s32.totalorder %s20, %s23
    %p32 = scmp.eq.s32.totalorder %s15, 1
    %p33 = por %p31, %p32
    %p34 = scmp.ne.s32.totalorder %s23, %s24
    %p35 = scmp.eq.s32.totalorder %s15, 0
    %p36 = por %p34, %p35
    %p37 = scmp.ne.s32.totalorder %s23, %s24
    %p38 = scmp.eq.s32.totalorder %s16, 1
    %p39 = por %p37, %p38
    %p41 = scmp.ne.s32.totalorder %s24, %s40
    %p42 = scmp.eq.s32.totalorder %s16, 0
    %p43 = por %p41, %p42
    %s45 = sadd.s32 %s44, 1
    %p48 = scmp.eq.s32.totalorder %s10, 1
    %p49 = scmp.ne.s32.totalorder %s44, %s46
    %p50 = scmp.eq.s32.totalorder %s10, 0
    %p51 = por %p49, %p50
    %p52 = scmp.ne.s32.totalorder %s44, %s46
    %p53 = scmp.eq.s32.totalorder %s15, 1
    %p54 = por %p52, %p53
    %p55 = scmp.ne.s32.totalorder %s46, %s47
    %p56 = scmp.eq.s32.totalorder %s15, 0
    %p57 = por %p55, %p56
    %p58 = scmp.ne.s32.totalorder %s46, %s47
    %p59 = scmp.eq.s32.totalorder %s16, 1
    %p60 = por %p58, %p59
    %p62 = scmp.ne.s32.totalorder %s47, %s61
    %p63 = scmp.eq.s32.totalorder %s16, 0
    %p64 = por %p62, %p63
    %s66 = sadd.s32 %s65, 1
    %p69 = scmp.eq.s32.totalorder %s10, 1
    %p70 = scmp.ne.s32.totalorder %s65, %s67
    %p71 = scmp.eq.s32.totalorder %s10, 0
    %p72 = por %p70, %p71
    %p73 = scmp.ne.s32.totalorder %s65, %s67
    %p74 = scmp.eq.s32.totalorder %s15, 1
    %p75 = por %p73, %p74
    %p76 = scmp.ne.s32.totalorder %s67, %s68
    %p77 = scmp.eq.s32.totalorder %s15, 0
    %p78 = por %p76, %p77
    %p79 = scmp.ne.s32.totalorder %s67, %s68
    %p80 = scmp.eq.s32.totalorder %s16, 1
    %p81 = por %p79, %p80
    %p83 = scmp.ne.s32.totalorder %s68, %s82
    %p84 = scmp.eq.s32.totalorder %s16, 0
    %p85 = por %p83, %p84
    %s87 = sadd.s32 %s86, 1
    %p90 = scmp.eq.s32.totalorder %s10, 1
    %p91 = scmp.ne.s32.totalorder %s86, %s88
    %p92 = scmp.eq.s32.totalorder %s10, 0
    %p93 = por %p91, %p92
    %p94 = scmp.ne.s32.totalorder %s86, %s88
    %p95 = scmp.eq.s32.totalorder %s15, 1
    %p96 = por %p94, %p95
    %p97 = scmp.ne.s32.totalorder %s88, %s89
    %p98 = scmp.eq.s32.totalorder %s15, 0
    %p99 = por %p97, %p98
    %p100 = scmp.ne.s32.totalorder %s88, %s89
    %p101 = scmp.eq.s32.totalorder %s16, 1
    %p102 = por %p100, %p101
    %p104 = scmp.ne.s32.totalorder %s89, %s103
    %p105 = scmp.eq.s32.totalorder %s16, 0
    %p106 = por %p104, %p105
    %s107 = ssub.s32 %s10, %s17
    %p108 = scmp.eq.s32.totalorder %s107, 0
    %s110 = sadd.s32 %s109, 1
    %s111 = scalar_select %p108, %s109, %s110
    %p114 = pneg %p108
    %p115 = scmp.eq.s32.totalorder %s10, 1
    %p116 = por %p114, %p115
    %p117 = scmp.ne.s32.totalorder %s109, %s112
    %p118 = scmp.eq.s32.totalorder %s10, 0
    %p119 = por %p117, %p118
    %p120 = scmp.ne.s32.totalorder %s109, %s112
    %p121 = scmp.eq.s32.totalorder %s15, 1
    %p122 = por %p120, %p121
    %p123 = scmp.ne.s32.totalorder %s112, %s113
    %p124 = scmp.eq.s32.totalorder %s15, 0
    %p125 = por %p123, %p124
    %p126 = scmp.ne.s32.totalorder %s112, %s113
    %p127 = scmp.eq.s32.totalorder %s16, 1
    %p128 = por %p126, %p127
    %p130 = scmp.ne.s32.totalorder %s113, %s129
    %p131 = scmp.eq.s32.totalorder %s16, 0
    %p132 = por %p130, %p131
    %p133 = scmp.le.s32.totalorder 1, %s10
    %p134 = scmp.lt.s32.totalorder %s10, 3
    %p135 = pnand %p133, %p134
    %p136 = pneg %p135
    // Predicated region
    $region9: #{separable_conv2d.1} parent=5 // pred_check
      _
    $region10: #{separable_conv2d.1} parent=5 // pred_check_branch
      %138 = sbr.rel (%p135) target = $region12
    $region11: #{separable_conv2d.1} parent=5 // pred_region
      %s139 = ssub.s32 %s10, 1
      // Predicated region
      $region13: #{separable_conv2d.1} parent=11 // pred_check
        %p140 = pneg %p57
      $region14: #{separable_conv2d.1} parent=11 // pred_check_branch
        %142 = sbr.rel (%p140) target = $region16
      $region15: #{separable_conv2d.1} parent=11 // pred_region
        _
      $region16: #{separable_conv2d.1} parent=11 // pred_fallthru
        _
      // Predicated region
      $region17: #{separable_conv2d.1} parent=11 // pred_check
        %p143 = pneg %p78
      $region18: #{separable_conv2d.1} parent=11 // pred_check_branch
        %145 = sbr.rel (%p143) target = $region20
      $region19: #{separable_conv2d.1} parent=11 // pred_region
        _
      $region20: #{separable_conv2d.1} parent=11 // pred_fallthru
        _
      // Predicated region
      $region21: #{separable_conv2d.1} parent=11 // pred_check
        %p146 = pneg %p99
      $region22: #{separable_conv2d.1} parent=11 // pred_check_branch
        %148 = sbr.rel (%p146) target = $region24
      $region23: #{separable_conv2d.1} parent=11 // pred_region
        _
      $region24: #{separable_conv2d.1} parent=11 // pred_fallthru
        _
    $region12: #{separable_conv2d.1} parent=5 // pred_fallthru
      _
    %p149 = scmp.lt.s32.totalorder %s10, 2
    // Predicated region
    $region25: #{separable_conv2d.1} parent=5 // pred_check
      %p150 = pneg %p149
    $region26: #{separable_conv2d.1} parent=5 // pred_check_branch
      %152 = sbr.rel (%p150) target = $region28
    $region27: #{separable_conv2d.1} parent=5 // pred_region
      // Predicated region
      $region29: #{separable_conv2d.1} parent=27 // pred_check
        %p153 = pneg %p30
      $region30: #{separable_conv2d.1} parent=27 // pred_check_branch
        %155 = sbr.rel (%p153) target = $region32
      $region31: #{separable_conv2d.1} parent=27 // pred_region
        %p156 = scmp.lt.s32.totalorder %s10, 1
        %s157 = scalar_select %p156, %s10, 1
        %s158 = smul.addr %s157, 2
        %s159 = smul.addr %s158, 4
        %s160 = scalar_lea.vmem %s0, %s159
      $region32: #{separable_conv2d.1} parent=27 // pred_fallthru
        _
    $region28: #{separable_conv2d.1} parent=5 // pred_fallthru
      _
    %p161 = scmp.le.s32.totalorder 1, %s10
    %p162 = scmp.lt.s32.totalorder %s10, 3
    %p163 = pnand %p161, %p162
    %p164 = pneg %p163
    // Predicated region
    $region33: #{separable_conv2d.1} parent=5 // pred_check
      _
    $region34: #{separable_conv2d.1} parent=5 // pred_check_branch
      %166 = sbr.rel (%p163) target = $region36
    $region35: #{separable_conv2d.1} parent=5 // pred_region
      %s167 = ssub.s32 %s10, 1
      %p168 = scmp.lt.s32.totalorder %s15, 1
      %s169 = scalar_select %p168, %s15, 1
      %s170 = smul.addr %s169, 2
      %s171 = smul.addr %s170, 4
      %s172 = scalar_lea.vmem %s0, %s171
      %p173 = pneg %p36
      %p174 = pneg %p33
      %p175 = pneg %p57
      %p176 = pneg %p54
      %p177 = pneg %p78
      %p178 = pneg %p75
      %p179 = pneg %p99
      %p180 = pneg %p96
      %p181 = pneg %p125
      %p182 = pneg %p122
      %p183 = scmp.lt.s32.totalorder %s15, 1
      %s184 = scalar_select %p183, %s15, 1
      %s185 = smul.addr %s184, 3
      %s186 = smul.addr %s185, 8
      %s187 = scalar_lea.vmem %s4, %s186
      %p188 = scmp.lt.s32.totalorder %s15, 1
      %s189 = scalar_select %p188, %s15, 1
      %s190 = smul.addr %s189, 2
      %s191 = smul.addr %s190, 4
      %s192 = scalar_lea.vmem %s0, %s191
      %p193 = scmp.lt.s32.totalorder %s15, 1
      %s194 = scalar_select %p193, %s15, 1
      %s195 = smul.addr %s194, 3
      %s196 = smul.addr %s195, 8
      %s197 = scalar_lea.vmem %s4, %s196
      %199 = vst [vmem:[#allocation2] sm:$0xff] 0.0
      %200 = vst [vmem:[#allocation2 + $0x8] sm:$0xff] 0.0
      %v201 = vld [vmem:[%s192] sm:$0xf]
      %203 = vrot.lane.b32.xlu0 %v201, 25
      %v204 = vpop.permute.xlu0 %203
      %vm206 = vcmask 330952
      %207 = vst.msk [vmem:[#allocation2] sm:$0xf] %vm206, %v204
      %v208 = vld [vmem:[%s192] sm:$0xf]
      %210 = vrot.lane.b32.xlu0 %v208, 33
      %v211 = vpop.permute.xlu0 %210
      %vm213 = vcmask 527752
      %214 = vst.msk [vmem:[#allocation2] sm:$0xf] %vm213, %v211
      %v215 = vld [vmem:[%s192] sm:$0xf]
      %217 = vrot.lane.b32.xlu0 %v215, 41
      %v218 = vpop.permute.xlu0 %217
      %vm220 = vcmask 724552
      %221 = vst.msk [vmem:[#allocation2] sm:$0xf] %vm220, %v218
      %v222 = vld [vmem:[%s192] sm:$0xf]
      %224 = vrot.lane.b32.xlu0 %v222, 49
      %v225 = vpop.permute.xlu0 %224
      %vm227 = vcmask 921352
      %228 = vst.msk [vmem:[#allocation2] sm:$0xf] %vm227, %v225
      %v229 = vld [vmem:[%s192] sm:$0xf]
      %231 = vrot.lane.b32.xlu0 %v229, 57
      %v232 = vpop.permute.xlu0 %231
      %v233 = vrot.slane %v232, 4
      %vm234 = vcmask 465920
      %v235 = vsel %vm234, %v233, %v232
      %vm237 = vcmask 1044424
      %vm238 = vcmask 72708
      %vm239 = vmor %vm238, %vm237
      %240 = vst.msk [vmem:[#allocation2] sm:$0xff] %vm239, %v235
      %v241 = vld [vmem:[%s192] sm:$0xf]
      %243 = vrot.lane.b32.xlu0 %v241, 65
      %v244 = vpop.permute.xlu0 %243
      %vm246 = vcmask 265352
      %247 = vst.msk [vmem:[#allocation2 + $0x4] sm:$0xf] %vm246, %v244
      %v248 = vld [vmem:[%s192] sm:$0xf]
      %250 = vrot.lane.b32.xlu0 %v248, 73
      %v251 = vpop.permute.xlu0 %250
      %vm253 = vcmask 462152
      %254 = vst.msk [vmem:[#allocation2 + $0x4] sm:$0xf] %vm253, %v251
      %v255 = vld [vmem:[%s192] sm:$0xf]
      %257 = vrot.lane.b32.xlu0 %v255, 81
      %v258 = vpop.permute.xlu0 %257
      %vm260 = vcmask 658952
      %261 = vst.msk [vmem:[#allocation2 + $0x4] sm:$0xf] %vm260, %v258
      %v262 = vld [vmem:[%s192 + $0x4] sm:$0xf]
      %264 = vrot.lane.b32.xlu0 %v262, 89
      %v265 = vpop.permute.xlu0 %264
      %vm267 = vcmask 855752
      %268 = vst.msk [vmem:[#allocation2 + $0x4] sm:$0xf] %vm267, %v265
      %v269 = vld [vmem:[%s192 + $0x4] sm:$0xf]
      %271 = vrot.lane.b32.xlu0 %v269, 97
      %v272 = vpop.permute.xlu0 %271
      %v273 = vrot.slane %v272, 4
      %vm274 = vcmask 793600
      %v275 = vsel %vm274, %v273, %v272
      %vm277 = vcmask 1044360
      %vm278 = vcmask 7172
      %vm279 = vmor %vm278, %vm277
      %280 = vst.msk [vmem:[#allocation2 + $0x4] sm:$0xff] %vm279, %v275
      %v281 = vld [vmem:[%s192 + $0x4] sm:$0xf]
      %283 = vrot.lane.b32.xlu0 %v281, 105
      %v284 = vpop.permute.xlu0 %283
      %vm286 = vcmask 199752
      %287 = vst.msk [vmem:[#allocation2 + $0x8] sm:$0xf] %vm286, %v284
      %v288 = vld [vmem:[%s192 + $0x4] sm:$0xf]
      %290 = vrot.lane.b32.xlu0 %v288, 113
      %v291 = vpop.permute.xlu0 %290
      %vm293 = vcmask 396552
      %294 = vst.msk [vmem:[#allocation2 + $0x8] sm:$0xf] %vm293, %v291
      %v295 = vld [vmem:[%s192 + $0x4] sm:$0xf]
      %297 = vrot.lane.b32.xlu0 %v295, 121
      %v298 = vpop.permute.xlu0 %297
      %vm300 = vcmask 593352
      %301 = vst.msk [vmem:[#allocation2 + $0x8] sm:$0xf] %vm300, %v298
      %v302 = vld [vmem:[%s192 + $0x4] sm:$0xf]
      %304 = vrot.lane.b32.xlu0 %v302, 1
      %v305 = vpop.permute.xlu0 %304
      %vm307 = vcmask 790152
      %308 = vst.msk [vmem:[#allocation2 + $0x8] sm:$0xf] %vm307, %v305
      %v309 = vld [vmem:[%s192 + $0x4] sm:$0xf]
      %311 = vrot.lane.b32.xlu0 %v309, 9
      %v312 = vpop.permute.xlu0 %311
      %vm314 = vcmask 986952
      %315 = vst.msk [vmem:[#allocation2 + $0x8] sm:$0xf] %vm314, %v312
      %v316 = vld [vmem:[%s192 + $0x4] sm:$0xf]
      %318 = vrot.lane.b32.xlu0 %v316, 17
      %v319 = vpop.permute.xlu0 %318
      %vm321 = vcmask 134152
      %322 = vst.msk [vmem:[#allocation2 + $0xc] sm:$0xf] %vm321, %v319
      %v323 = vld [vmem:[#allocation2] sm:$0xff]
      %v324 = vld [vmem:[#allocation2 + $0x8] sm:$0xf]
      %v325 = vld [vmem:[#allocation2] sm:$0xff]
      %v326 = vld [vmem:[#allocation2 + $0x8] sm:$0xff]
      %v328 = vcombine.high %v323, %v323
      %v332 = vcombine.low %v325, %v325
      %v333 = vcombine.low %v326, %v326
      %334 = vrot.lane.b32.xlu0 %v332, 127
      %v335 = vpop.permute.xlu0 %334
      %336 = vrot.lane.b32.xlu0 %v325, 127
      %v337 = vpop.permute.xlu0 %336
      %338 = vrot.lane.b32.xlu0 %v333, 127
      %v339 = vpop.permute.xlu0 %338
      %340 = vrot.lane.b32.xlu0 %v326, 127
      %v341 = vpop.permute.xlu0 %340
      %vm342 = vcmask 1039360
      %v343 = vsel %vm342, %v335, %v337
      %v344 = vsel %vm342, %v337, %v339
      %v345 = vsel %vm342, %v339, %v341
      %v349 = vcombine.high %v325, %v325
      %v350 = vcombine.high %v326, %v326
      %351 = vrot.lane.b32.xlu0 %v325, 126
      %v352 = vpop.permute.xlu0 %351
      %353 = vrot.lane.b32.xlu0 %v349, 126
      %v354 = vpop.permute.xlu0 %353
      %355 = vrot.lane.b32.xlu0 %v326, 126
      %v356 = vpop.permute.xlu0 %355
      %357 = vrot.lane.b32.xlu0 %v350, 126
      %v358 = vpop.permute.xlu0 %357
      %vm359 = vcmask 1031168
      %v360 = vsel %vm359, %v352, %v354
      %v361 = vsel %vm359, %v354, %v356
      %v362 = vsel %vm359, %v356, %v358
      %366 = vrot.lane.b32.xlu0 %v332, 104
      %v367 = vpop.permute.xlu0 %366
      %368 = vrot.lane.b32.xlu0 %v325, 104
      %v369 = vpop.permute.xlu0 %368
      %370 = vrot.lane.b32.xlu0 %v333, 104
      %v371 = vpop.permute.xlu0 %370
      %372 = vrot.lane.b32.xlu0 %v326, 104
      %v373 = vpop.permute.xlu0 %372
      %vm374 = vcmask 850944
      %v375 = vsel %vm374, %v367, %v369
      %v376 = vsel %vm374, %v369, %v371
      %v377 = vsel %vm374, %v371, %v373
      %381 = vrot.lane.b32.xlu0 %v325, 103
      %v382 = vpop.permute.xlu0 %381
      %383 = vrot.lane.b32.xlu0 %v349, 103
      %v384 = vpop.permute.xlu0 %383
      %385 = vrot.lane.b32.xlu0 %v326, 103
      %v386 = vpop.permute.xlu0 %385
      %387 = vrot.lane.b32.xlu0 %v350, 103
      %v388 = vpop.permute.xlu0 %387
      %vm389 = vcmask 842752
      %v390 = vsel %vm389, %v382, %v384
      %v391 = vsel %vm389, %v384, %v386
      %v392 = vsel %vm389, %v386, %v388
      %396 = vrot.lane.b32.xlu0 %v332, 102
      %v397 = vpop.permute.xlu0 %396
      %398 = vrot.lane.b32.xlu0 %v325, 102
      %v399 = vpop.permute.xlu0 %398
      %400 = vrot.lane.b32.xlu0 %v333, 102
      %v401 = vpop.permute.xlu0 %400
      %402 = vrot.lane.b32.xlu0 %v326, 102
      %v403 = vpop.permute.xlu0 %402
      %vm404 = vcmask 834560
      %v405 = vsel %vm404, %v397, %v399
      %v406 = vsel %vm404, %v399, %v401
      %v407 = vsel %vm404, %v401, %v403
      %411 = vrot.lane.b32.xlu0 %v325, 80
      %v412 = vpop.permute.xlu0 %411
      %413 = vrot.lane.b32.xlu0 %v349, 80
      %v414 = vpop.permute.xlu0 %413
      %415 = vrot.lane.b32.xlu0 %v326, 80
      %v416 = vpop.permute.xlu0 %415
      %417 = vrot.lane.b32.xlu0 %v350, 80
      %v418 = vpop.permute.xlu0 %417
      %vm419 = vcmask 654336
      %v420 = vsel %vm419, %v412, %v414
      %v421 = vsel %vm419, %v414, %v416
      %v422 = vsel %vm419, %v416, %v418
      %426 = vrot.lane.b32.xlu0 %v332, 79
      %v427 = vpop.permute.xlu0 %426
      %428 = vrot.lane.b32.xlu0 %v325, 79
      %v429 = vpop.permute.xlu0 %428
      %430 = vrot.lane.b32.xlu0 %v333, 79
      %v431 = vpop.permute.xlu0 %430
      %432 = vrot.lane.b32.xlu0 %v326, 79
      %v433 = vpop.permute.xlu0 %432
      %vm434 = vcmask 646144
      %v435 = vsel %vm434, %v427, %v429
      %v436 = vsel %vm434, %v429, %v431
      %v437 = vsel %vm434, %v431, %v433
      %441 = vrot.lane.b32.xlu0 %v325, 78
      %v442 = vpop.permute.xlu0 %441
      %443 = vrot.lane.b32.xlu0 %v349, 78
      %v444 = vpop.permute.xlu0 %443
      %445 = vrot.lane.b32.xlu0 %v326, 78
      %v446 = vpop.permute.xlu0 %445
      %447 = vrot.lane.b32.xlu0 %v350, 78
      %v448 = vpop.permute.xlu0 %447
      %vm449 = vcmask 637952
      %v450 = vsel %vm449, %v442, %v444
      %v451 = vsel %vm449, %v444, %v446
      %v452 = vsel %vm449, %v446, %v448
      %vm456 = vcmask 1043456
      %v457 = vsel %vm456, %v323, %v343
      %v458 = vsel %vm456, %v328, %v344
      %v459 = vsel %vm456, %v324, %v345
      %v460 = vsel %vm456, %v360, %v375
      %v461 = vsel %vm456, %v361, %v376
      %v462 = vsel %vm456, %v362, %v377
      %v463 = vsel %vm456, %v390, %v405
      %v464 = vsel %vm456, %v391, %v406
      %v465 = vsel %vm456, %v392, %v407
      %v466 = vsel %vm456, %v420, %v435
      %v467 = vsel %vm456, %v421, %v436
      %v468 = vsel %vm456, %v422, %v437
      %v469 = vpack.c.bf16 %v460, %v457
      %v470 = vpack.c.bf16 %v461, %v458
      %v471 = vpack.c.bf16 %v462, %v459
      %v472 = vpack.c.bf16 %v466, %v463
      %v473 = vpack.c.bf16 %v467, %v464
      %v474 = vpack.c.bf16 %v468, %v465
      %v475 = vpack.c.bf16 %v450, %v450
      %v476 = vpack.c.bf16 %v451, %v451
      %v477 = vpack.c.bf16 %v452, %v452
      %v478 = vunpack.c.l.bf16 %v469
      %v479 = vunpack.c.l.bf16 %v470
      %v480 = vunpack.c.l.bf16 %v471
      %v481 = vunpack.c.h.bf16 %v469
      %v482 = vunpack.c.h.bf16 %v470
      %v483 = vunpack.c.h.bf16 %v471
      %v484 = vunpack.c.l.bf16 %v472
      %v485 = vunpack.c.l.bf16 %v473
      %v486 = vunpack.c.l.bf16 %v474
      %v487 = vunpack.c.h.bf16 %v472
      %v488 = vunpack.c.h.bf16 %v473
      %v489 = vunpack.c.h.bf16 %v474
      %v490 = vunpack.c.l.bf16 %v475
      %v491 = vunpack.c.l.bf16 %v476
      %v492 = vunpack.c.l.bf16 %v477
      %v493 = vsub.f32 %v457, %v478
      %v494 = vsub.f32 %v458, %v479
      %v495 = vsub.f32 %v459, %v480
      %v496 = vsub.f32 %v460, %v481
      %v497 = vsub.f32 %v461, %v482
      %v498 = vsub.f32 %v462, %v483
      %v499 = vsub.f32 %v463, %v484
      %v500 = vsub.f32 %v464, %v485
      %v501 = vsub.f32 %v465, %v486
      %v502 = vsub.f32 %v466, %v487
      %v503 = vsub.f32 %v467, %v488
      %v504 = vsub.f32 %v468, %v489
      %v505 = vsub.f32 %v450, %v490
      %v506 = vsub.f32 %v451, %v491
      %v507 = vsub.f32 %v452, %v492
      %v508 = vpack.c.bf16 %v496, %v493
      %v509 = vpack.c.bf16 %v497, %v494
      %v510 = vpack.c.bf16 %v498, %v495
      %v511 = vpack.c.bf16 %v502, %v499
      %v512 = vpack.c.bf16 %v503, %v500
      %v513 = vpack.c.bf16 %v504, %v501
      %v514 = vpack.c.bf16 %v505, %v505
      %v515 = vpack.c.bf16 %v506, %v506
      %v516 = vpack.c.bf16 %v507, %v507
      %v517 = vld [vmem:[%s1] sm:$0xf]
      %v518 = vld [vmem:[%s2] sm:$0xf]
      %vm519 = vcmask 293888
      %v521 = vsel %vm519, %v517, 0
      %vm523 = vcmask 1041408
      %v525 = vsel %vm523, %v514, 0
      %v528 = vsel %vm523, %v515, 0
      %v531 = vsel %vm523, %v516, 0
      %533 = vmatprep.subr.bf16.mxu0 %v509
      %534 = vmatpush1.bf16.msra.mxu0 %v508
      %535 = vmatprep.subr.bf16.mxu0 %v512
      %536 = vmatpush1.bf16.msra.mxu0 %v511
      %537 = vmatprep.subr.bf16.mxu0 %v528
      %538 = vmatpush1.bf16.msra.mxu0 %v525
      %539 = vmatprep.subr.bf16.mxu0 0
      %540 = vmatpush1.bf16.msra.mxu0 0
      %541 = vmatprep.subr.bf16.mxu0 0
      %542 = vmatpush1.bf16.msra.mxu0 0
      %543 = vmatprep.subr.bf16.mxu0 0
      %544 = vmatpush1.bf16.msra.mxu0 0
      %545 = vmatprep.subr.bf16.mxu0 0
      %546 = vmatpush1.bf16.msra.mxu0 0
      %547 = vmatprep.subr.bf16.mxu0 0
      %548 = vmatpush1.bf16.msra.mxu0 0
      %549 = vmatprep.subr.bf16.mxu0 0
      %550 = vmatpush1.bf16.msra.mxu0 0
      %551 = vmatprep.subr.bf16.mxu0 0
      %552 = vmatpush1.bf16.msra.mxu0 0
      %553 = vmatprep.subr.bf16.mxu0 0
      %554 = vmatpush1.bf16.msra.mxu0 0
      %555 = vmatprep.subr.bf16.mxu0 0
      %556 = vmatpush1.bf16.msra.mxu0 0
      %557 = vmatprep.subr.bf16.mxu0 0
      %558 = vmatpush1.bf16.msra.mxu0 0
      %559 = vmatprep.subr.bf16.mxu0 0
      %560 = vmatpush1.bf16.msra.mxu0 0
      %561 = vmatprep.subr.bf16.mxu0 0
      %562 = vmatpush1.bf16.msra.mxu0 0
      %563 = vmatprep.subr.bf16.mxu0 0
      %564 = vmatpush1.bf16.msra.mxu0 0
      %565 = vmatprep.mubr.bf16.mxu0 0
      %566 = vmatmul.mubr.bf16.gmra.mrb[0].mxu0 %v521
      %v567 = vpop.f32.mrb[0].mxu0
      %v568 = vadd.f32 0.0, %v567
      %v569 = vpop.f32.mrb[0].mxu0
      %v570 = vadd.f32 0.0, %v569
      %v571 = vpop.f32.mrb[0].mxu0
      %v572 = vpop.f32.mrb[0].mxu0
      %573 = vdwg.mxu0
      %574 = vmatprep.subr.bf16.mxu0 0
      %575 = vmatpush1.bf16.msra.mxu0 %v510
      %576 = vmatprep.subr.bf16.mxu0 0
      %577 = vmatpush1.bf16.msra.mxu0 %v513
      %578 = vmatprep.subr.bf16.mxu0 0
      %579 = vmatpush1.bf16.msra.mxu0 %v531
      %580 = vmatprep.subr.bf16.mxu0 0
      %581 = vmatpush1.bf16.msra.mxu0 0
      %582 = vmatprep.subr.bf16.mxu0 0
      %583 = vmatpush1.bf16.msra.mxu0 0
      %584 = vmatprep.subr.bf16.mxu0 0
      %585 = vmatpush1.bf16.msra.mxu0 0
      %586 = vmatprep.subr.bf16.mxu0 0
      %587 = vmatpush1.bf16.msra.mxu0 0
      %588 = vmatprep.subr.bf16.mxu0 0
      %589 = vmatpush1.bf16.msra.mxu0 0
      %590 = vmatprep.subr.bf16.mxu0 0
      %591 = vmatpush1.bf16.msra.mxu0 0
      %592 = vmatprep.subr.bf16.mxu0 0
      %593 = vmatpush1.bf16.msra.mxu0 0
      %594 = vmatprep.subr.bf16.mxu0 0
      %595 = vmatpush1.bf16.msra.mxu0 0
      %596 = vmatprep.subr.bf16.mxu0 0
      %597 = vmatpush1.bf16.msra.mxu0 0
      %598 = vmatprep.subr.bf16.mxu0 0
      %599 = vmatpush1.bf16.msra.mxu0 0
      %600 = vmatprep.subr.bf16.mxu0 0
      %601 = vmatpush1.bf16.msra.mxu0 0
      %602 = vmatprep.subr.bf16.mxu0 0
      %603 = vmatpush1.bf16.msra.mxu0 0
      %604 = vmatprep.subr.bf16.mxu0 0
      %605 = vmatpush1.bf16.msra.mxu0 0
      %606 = vmatprep.mubr.bf16.mxu0 0
      %607 = vmatmul.mubr.bf16.gmra.mrb[0].mxu0 %v521
      %v608 = vpop.f32.mrb[0].mxu0
      %v609 = vadd.f32 0.0, %v608
      %v610 = vpop.f32.mrb[0].mxu0
      %v611 = vpop.f32.mrb[0].mxu0
      %v612 = vpop.f32.mrb[0].mxu0
      %613 = vdwg.mxu0
      %v615 = vsel %vm523, %v475, 0
      %v618 = vsel %vm523, %v476, 0
      %v621 = vsel %vm523, %v477, 0
      %623 = vmatprep.subr.bf16.mxu0 %v470
      %624 = vmatpush1.bf16.msra.mxu0 %v469
      %625 = vmatprep.subr.bf16.mxu0 %v473
      %626 = vmatpush1.bf16.msra.mxu0 %v472
      %627 = vmatprep.subr.bf16.mxu0 %v618
      %628 = vmatpush1.bf16.msra.mxu0 %v615
      %629 = vmatprep.subr.bf16.mxu0 0
      %630 = vmatpush1.bf16.msra.mxu0 0
      %631 = vmatprep.subr.bf16.mxu0 0
      %632 = vmatpush1.bf16.msra.mxu0 0
      %633 = vmatprep.subr.bf16.mxu0 0
      %634 = vmatpush1.bf16.msra.mxu0 0
      %635 = vmatprep.subr.bf16.mxu0 0
      %636 = vmatpush1.bf16.msra.mxu0 0
      %637 = vmatprep.subr.bf16.mxu0 0
      %638 = vmatpush1.bf16.msra.mxu0 0
      %639 = vmatprep.subr.bf16.mxu0 0
      %640 = vmatpush1.bf16.msra.mxu0 0
      %641 = vmatprep.subr.bf16.mxu0 0
      %642 = vmatpush1.bf16.msra.mxu0 0
      %643 = vmatprep.subr.bf16.mxu0 0
      %644 = vmatpush1.bf16.msra.mxu0 0
      %645 = vmatprep.subr.bf16.mxu0 0
      %646 = vmatpush1.bf16.msra.mxu0 0
      %647 = vmatprep.subr.bf16.mxu0 0
      %648 = vmatpush1.bf16.msra.mxu0 0
      %649 = vmatprep.subr.bf16.mxu0 0
      %650 = vmatpush1.bf16.msra.mxu0 0
      %651 = vmatprep.subr.bf16.mxu0 0
      %652 = vmatpush1.bf16.msra.mxu0 0
      %653 = vmatprep.subr.bf16.mxu0 0
      %654 = vmatpush1.bf16.msra.mxu0 0
      %655 = vmatprep.mubr.bf16.mxu0 0
      %656 = vmatmul.mubr.bf16.gmra.mrb[0].mxu0 %v521
      %v657 = vpop.f32.mrb[0].mxu0
      %v658 = vadd.f32 %v568, %v657
      %v659 = vpop.f32.mrb[0].mxu0
      %v660 = vadd.f32 %v570, %v659
      %v661 = vpop.f32.mrb[0].mxu0
      %v662 = vpop.f32.mrb[0].mxu0
      %663 = vdwg.mxu0
      %664 = vmatprep.subr.bf16.mxu0 0
      %665 = vmatpush1.bf16.msra.mxu0 %v471
      %666 = vmatprep.subr.bf16.mxu0 0
      %667 = vmatpush1.bf16.msra.mxu0 %v474
      %668 = vmatprep.subr.bf16.mxu0 0
      %669 = vmatpush1.bf16.msra.mxu0 %v621
      %670 = vmatprep.subr.bf16.mxu0 0
      %671 = vmatpush1.bf16.msra.mxu0 0
      %672 = vmatprep.subr.bf16.mxu0 0
      %673 = vmatpush1.bf16.msra.mxu0 0
      %674 = vmatprep.subr.bf16.mxu0 0
      %675 = vmatpush1.bf16.msra.mxu0 0
      %676 = vmatprep.subr.bf16.mxu0 0
      %677 = vmatpush1.bf16.msra.mxu0 0
      %678 = vmatprep.subr.bf16.mxu0 0
      %679 = vmatpush1.bf16.msra.mxu0 0
      %680 = vmatprep.subr.bf16.mxu0 0
      %681 = vmatpush1.bf16.msra.mxu0 0
      %682 = vmatprep.subr.bf16.mxu0 0
      %683 = vmatpush1.bf16.msra.mxu0 0
      %684 = vmatprep.subr.bf16.mxu0 0
      %685 = vmatpush1.bf16.msra.mxu0 0
      %686 = vmatprep.subr.bf16.mxu0 0
      %687 = vmatpush1.bf16.msra.mxu0 0
      %688 = vmatprep.subr.bf16.mxu0 0
      %689 = vmatpush1.bf16.msra.mxu0 0
      %690 = vmatprep.subr.bf16.mxu0 0
      %691 = vmatpush1.bf16.msra.mxu0 0
      %692 = vmatprep.subr.bf16.mxu0 0
      %693 = vmatpush1.bf16.msra.mxu0 0
      %694 = vmatprep.subr.bf16.mxu0 0
      %695 = vmatpush1.bf16.msra.mxu0 0
      %696 = vmatprep.mubr.bf16.mxu0 0
      %697 = vmatmul.mubr.bf16.gmra.mrb[0].mxu0 %v521
      %v698 = vpop.f32.mrb[0].mxu0
      %v699 = vadd.f32 %v609, %v698
      %v700 = vpop.f32.mrb[0].mxu0
      %v701 = vpop.f32.mrb[0].mxu0
      %v702 = vpop.f32.mrb[0].mxu0
      %703 = vdwg.mxu0
      %v705 = vsel %vm519, %v518, 0
      %707 = vmatprep.subr.bf16.mxu0 %v470
      %708 = vmatpush1.bf16.msra.mxu0 %v469
      %709 = vmatprep.subr.bf16.mxu0 %v473
      %710 = vmatpush1.bf16.msra.mxu0 %v472
      %711 = vmatprep.subr.bf16.mxu0 %v618
      %712 = vmatpush1.bf16.msra.mxu0 %v615
      %713 = vmatprep.subr.bf16.mxu0 0
      %714 = vmatpush1.bf16.msra.mxu0 0
      %715 = vmatprep.subr.bf16.mxu0 0
      %716 = vmatpush1.bf16.msra.mxu0 0
      %717 = vmatprep.subr.bf16.mxu0 0
      %718 = vmatpush1.bf16.msra.mxu0 0
      %719 = vmatprep.subr.bf16.mxu0 0
      %720 = vmatpush1.bf16.msra.mxu0 0
      %721 = vmatprep.subr.bf16.mxu0 0
      %722 = vmatpush1.bf16.msra.mxu0 0
      %723 = vmatprep.subr.bf16.mxu0 0
      %724 = vmatpush1.bf16.msra.mxu0 0
      %725 = vmatprep.subr.bf16.mxu0 0
      %726 = vmatpush1.bf16.msra.mxu0 0
      %727 = vmatprep.subr.bf16.mxu0 0
      %728 = vmatpush1.bf16.msra.mxu0 0
      %729 = vmatprep.subr.bf16.mxu0 0
      %730 = vmatpush1.bf16.msra.mxu0 0
      %731 = vmatprep.subr.bf16.mxu0 0
      %732 = vmatpush1.bf16.msra.mxu0 0
      %733 = vmatprep.subr.bf16.mxu0 0
      %734 = vmatpush1.bf16.msra.mxu0 0
      %735 = vmatprep.subr.bf16.mxu0 0
      %736 = vmatpush1.bf16.msra.mxu0 0
      %737 = vmatprep.subr.bf16.mxu0 0
      %738 = vmatpush1.bf16.msra.mxu0 0
      %739 = vmatprep.mubr.bf16.mxu0 0
      %740 = vmatmul.mubr.bf16.gmra.mrb[0].mxu0 %v705
      %v741 = vpop.f32.mrb[0].mxu0
      %v742 = vadd.f32 0.0, %v741
      %v743 = vpop.f32.mrb[0].mxu0
      %v744 = vadd.f32 0.0, %v743
      %v745 = vpop.f32.mrb[0].mxu0
      %v746 = vpop.f32.mrb[0].mxu0
      %747 = vdwg.mxu0
      %748 = vmatprep.subr.bf16.mxu0 0
      %749 = vmatpush1.bf16.msra.mxu0 %v471
      %750 = vmatprep.subr.bf16.mxu0 0
      %751 = vmatpush1.bf16.msra.mxu0 %v474
      %752 = vmatprep.subr.bf16.mxu0 0
      %753 = vmatpush1.bf16.msra.mxu0 %v621
      %754 = vmatprep.subr.bf16.mxu0 0
      %755 = vmatpush1.bf16.msra.mxu0 0
      %756 = vmatprep.subr.bf16.mxu0 0
      %757 = vmatpush1.bf16.msra.mxu0 0
      %758 = vmatprep.subr.bf16.mxu0 0
      %759 = vmatpush1.bf16.msra.mxu0 0
      %760 = vmatprep.subr.bf16.mxu0 0
      %761 = vmatpush1.bf16.msra.mxu0 0
      %762 = vmatprep.subr.bf16.mxu0 0
      %763 = vmatpush1.bf16.msra.mxu0 0
      %764 = vmatprep.subr.bf16.mxu0 0
      %765 = vmatpush1.bf16.msra.mxu0 0
      %766 = vmatprep.subr.bf16.mxu0 0
      %767 = vmatpush1.bf16.msra.mxu0 0
      %768 = vmatprep.subr.bf16.mxu0 0
      %769 = vmatpush1.bf16.msra.mxu0 0
      %770 = vmatprep.subr.bf16.mxu0 0
      %771 = vmatpush1.bf16.msra.mxu0 0
      %772 = vmatprep.subr.bf16.mxu0 0
      %773 = vmatpush1.bf16.msra.mxu0 0
      %774 = vmatprep.subr.bf16.mxu0 0
      %775 = vmatpush1.bf16.msra.mxu0 0
      %776 = vmatprep.subr.bf16.mxu0 0
      %777 = vmatpush1.bf16.msra.mxu0 0
      %778 = vmatprep.subr.bf16.mxu0 0
      %779 = vmatpush1.bf16.msra.mxu0 0
      %780 = vmatprep.mubr.bf16.mxu0 0
      %781 = vmatmul.mubr.bf16.gmra.mrb[0].mxu0 %v705
      %v782 = vpop.f32.mrb[0].mxu0
      %v783 = vadd.f32 0.0, %v782
      %v784 = vpop.f32.mrb[0].mxu0
      %v785 = vpop.f32.mrb[0].mxu0
      %v786 = vpop.f32.mrb[0].mxu0
      %787 = vdwg.mxu0
      %v788 = vadd.f32 %v658, %v742
      %v789 = vadd.f32 %v660, %v744
      %v790 = vadd.f32 %v699, %v783
      %v791 = vld [vmem:[%s3] sm:$0xff]
      %793 = vset.pattern.permute.xlu0 0
      %794 = vperm.xlu0 %793, %v791
      %v795 = vpop.permute.xlu0 %794
      %v797 = vadd.f32 %v788, %v795
      %v798 = vadd.f32 %v789, %v795
      %v799 = vadd.f32 %v790, %v795
      %800 = vst [vmem:[%s197] sm:$0xff] %v797
      %801 = vst [vmem:[%s197 + $0x8] sm:$0xff] %v798
      %802 = vst [vmem:[%s197 + $0x10] sm:$0xff] %v799
      %p803 = scmp.lt.s32.totalorder %s15, 1
      %s804 = scalar_select %p803, %s15, 1
      %s805 = smul.addr %s804, 3
      %s806 = smul.addr %s805, 8
      %s807 = scalar_lea.vmem %s4, %s806
      // Predicated region
      $region37: #{separable_conv2d.1} parent=35 // pred_check
        %p808 = pneg %p122
      $region38: #{separable_conv2d.1} parent=35 // pred_check_branch
        %810 = sbr.rel (%p808) target = $region40
      $region39: #{separable_conv2d.1} parent=35 // pred_region
        _
      $region40: #{separable_conv2d.1} parent=35 // pred_fallthru
        _
    $region36: #{separable_conv2d.1} parent=5 // pred_fallthru
      _
    %p811 = scmp.le.s32.totalorder 2, %s10
    // Predicated region
    $region41: #{separable_conv2d.1} parent=5 // pred_check
      %p812 = pneg %p811
    $region42: #{separable_conv2d.1} parent=5 // pred_check_branch
      %814 = sbr.rel (%p812) target = $region44
    $region43: #{separable_conv2d.1} parent=5 // pred_region
      %s815 = ssub.s32 %s10, 2
      // Predicated region
      $region45: #{separable_conv2d.1} parent=43 // pred_check
        %p816 = pneg %p128
      $region46: #{separable_conv2d.1} parent=43 // pred_check_branch
        %818 = sbr.rel (%p816) target = $region48
      $region47: #{separable_conv2d.1} parent=43 // pred_region
        %p819 = scmp.lt.s32.totalorder %s16, 1
        %s820 = scalar_select %p819, %s16, 1
        %s821 = smul.addr %s820, 3
        %s822 = smul.addr %s821, 8
        %s823 = scalar_lea.vmem %s4, %s822
      $region48: #{separable_conv2d.1} parent=43 // pred_fallthru
        _
    $region44: #{separable_conv2d.1} parent=5 // pred_fallthru
      _
  $region6: #{separable_conv2d.1} parent=0 // loop_footer
    %s14 = sadd.s32 1, %s10
  $region7: #{separable_conv2d.1} parent=0 // loop_footer_branch
    %9 = sbr.rel target = $region3
  $region8: #{separable_conv2d.1} parent=0 // loop_exit
    _

</llo_original>
